<compile_context>
chip_gen: v6e
topology: v6e:2x2x1
jax: 0.10.0
libtpu: 0.0.40
codegen_flags: <defaults>
</compile_context>

<pallas_src>
import jax
import jax.numpy as jnp
from jax.experimental import pallas as pl
from jax.experimental.pallas import tpu as pltpu


def _round_up(n: int, k: int) -> int:
    return ((n + k - 1) // k) * k


def _choose_th(H: int, th: int) -> int:
    # Single hidden tile if it already fits; otherwise keep th a multiple of 64
    # so the packed (D, 2*th) block stays 128-lane aligned and (th, D) stays
    # 8-sublane aligned.
    if th >= H:
        return _round_up(H, 8)
    return _round_up(th, 64)


def ffn_kernel(x_ref, w13_ref, w2t_ref, o_ref, acc_ref):
    # x_ref:   (tm, D)        activation tile (compute dtype)
    # w13_ref: (D, 2*th)      [:, :th] = w1^T hidden-tile, [:, th:] = w3^T tile
    # w2t_ref: (th, D)        w2^T hidden-tile
    # o_ref:   (tm, D)        output tile
    # acc_ref: (tm, D) f32    accumulator across the hidden (k) grid axis
    k = pl.program_id(1)

    @pl.when(k == 0)
    def _init():
        acc_ref[...] = jnp.zeros_like(acc_ref)

    x = x_ref[...]
    # Fused up-projection: one MXU pass produces both h1 and h3 chunks.
    h13 = jnp.dot(x, w13_ref[...], preferred_element_type=jnp.float32)  # (tm, 2*th)
    th = h13.shape[1] // 2
    h1 = h13[:, :th]
    h3 = h13[:, th:]
    # SwiGLU gate in f32: silu(h1) * h3.
    g = (h1 * jax.nn.sigmoid(h1)) * h3
    # Down-projection chunk, accumulated in f32.
    acc_ref[...] += jnp.dot(g.astype(w2t_ref.dtype), w2t_ref[...],
                            preferred_element_type=jnp.float32)

    @pl.when(k == pl.num_programs(1) - 1)
    def _finalize():
        o_ref[...] = acc_ref[...].astype(o_ref.dtype)


def prepare_ffn_weights(w1, w2, w3, *, th, compute_dtype=jnp.bfloat16):
    """One-time weight prep (do this at parameter-load time, not per call).

    w1, w3: [H, D]; w2: [D, H] (PyTorch nn.Linear layout, bias=False).
    Returns (w13, w2t):
      w13: (D, 2*Hp) with each th-wide hidden tile laid out as
           [w1^T tile | w3^T tile] so one BlockSpec block covers both.
      w2t: (Hp, D)
    Hidden dim is zero-padded to Hp = multiple of th (zero pads contribute 0).
    """
    H, D = w1.shape
    Hp = _round_up(H, th)
    w1t = w1.T.astype(compute_dtype)   # (D, H)
    w3t = w3.T.astype(compute_dtype)   # (D, H)
    w2t = w2.T.astype(compute_dtype)   # (H, D)
    if Hp != H:
        pad = Hp - H
        w1t = jnp.pad(w1t, ((0, 0), (0, pad)))
        w3t = jnp.pad(w3t, ((0, 0), (0, pad)))
        w2t = jnp.pad(w2t, ((0, pad), (0, 0)))
    nk = Hp // th
    w13 = jnp.concatenate(
        [w1t.reshape(D, nk, th), w3t.reshape(D, nk, th)], axis=2
    ).reshape(D, nk * 2 * th)
    return w13, w2t


def feed_forward_packed(x, w13, w2t, th, *, tm=256, out_dtype=None,
                        compute_dtype=None):
    """x: [B, S, D]; w13/w2t from prepare_ffn_weights (same th)."""
    B, S, D = x.shape
    Hp = w2t.shape[0]
    assert Hp % th == 0 and w13.shape == (D, 2 * Hp)
    nk = Hp // th
    if out_dtype is None:
        out_dtype = x.dtype
    if compute_dtype is None:
        compute_dtype = w2t.dtype

    T = B * S
    tm_eff = _round_up(T, 8) if tm >= T else _round_up(tm, 8)
    Tp = _round_up(T, tm_eff)
    nt = Tp // tm_eff

    x2d = x.reshape(T, D).astype(compute_dtype)
    if Tp != T:
        x2d = jnp.pad(x2d, ((0, Tp - T), (0, 0)))

    cbytes = jnp.dtype(compute_dtype).itemsize
    obytes = jnp.dtype(out_dtype).itemsize
    # Double-buffered input/output tiles + resident f32 accumulator.
    need = 2 * (tm_eff * D * cbytes + D * 2 * th * cbytes + th * D * cbytes
                + tm_eff * D * obytes) + tm_eff * D * 4
    vmem_limit = min(max(32 << 20, int(1.5 * need)), 64 << 20)

    cost = pl.CostEstimate(
        flops=int(2 * Tp * D * (2 * Hp) + 2 * Tp * Hp * D + 3 * Tp * Hp),
        transcendentals=int(Tp * Hp),
        bytes_accessed=int(Tp * D * cbytes          # x
                           + 3 * Hp * D * cbytes    # w13 + w2t
                           + Tp * D * obytes),      # out
    )

    out2d = pl.pallas_call(
        ffn_kernel,
        out_shape=jax.ShapeDtypeStruct((Tp, D), out_dtype),
        grid_spec=pltpu.PrefetchScalarGridSpec(
            num_scalar_prefetch=0,
            grid=(nt, nk),
            in_specs=[
                pl.BlockSpec((tm_eff, D), lambda i, k: (i, 0)),      # x tile
                pl.BlockSpec((D, 2 * th), lambda i, k: (0, k)),      # [w1|w3]^T tile
                pl.BlockSpec((th, D), lambda i, k: (k, 0)),          # w2^T tile
            ],
            out_specs=pl.BlockSpec((tm_eff, D), lambda i, k: (i, 0)),
            scratch_shapes=[pltpu.VMEM((tm_eff, D), jnp.float32)],
        ),
        compiler_params=pltpu.CompilerParams(
            dimension_semantics=("parallel", "arbitrary"),
            vmem_limit_bytes=vmem_limit,
        ),
        cost_estimate=cost,
    )(x2d, w13, w2t)

    if Tp != T:
        out2d = out2d[:T]
    return out2d.reshape(B, S, D)


def feed_forward(x, w1, w2, w3, *, tm=256, th=512,
                 compute_dtype=jnp.bfloat16):
    """Convenience wrapper. In a real model, call prepare_ffn_weights once at
    load time and reuse (w13, w2t) across forward passes."""
    H = w1.shape[0]
    th_eff = _choose_th(H, th)
    w13, w2t = prepare_ffn_weights(w1, w2, w3, th=th_eff,
                                   compute_dtype=compute_dtype)
    return feed_forward_packed(x, w13, w2t, th_eff, tm=tm,
                               out_dtype=x.dtype, compute_dtype=compute_dtype)


def feed_forward_ref(x, w1, w2, w3):
    h1 = jnp.einsum("bsd,hd->bsh", x, w1)
    h3 = jnp.einsum("bsd,hd->bsh", x, w3)
    g = (h1 * jax.nn.sigmoid(h1)) * h3
    return jnp.einsum("bsh,dh->bsd", g, w2)


if __name__ == "__main__":
    # Small shapes consistent with the module (ModelArgs with explicit hidden_dim).
    B, S, D, H = 2, 8, 64, 128

    key = jax.random.PRNGKey(0)
    kx, k1, k2, k3 = jax.random.split(key, 4)
    x = jax.random.normal(kx, (B, S, D), dtype=jnp.float32)
    # nn.Linear(in, out, bias=False).weight has shape [out, in]
    w1 = jax.random.normal(k1, (H, D), dtype=jnp.float32) * 0.05
    w2 = jax.random.normal(k2, (D, H), dtype=jnp.float32) * 0.05
    w3 = jax.random.normal(k3, (H, D), dtype=jnp.float32) * 0.05

    ref = feed_forward_ref(x, w1, w2, w3)

    # f32 compute path: strict numerical check against the reference.
    out_f32 = jax.block_until_ready(
        feed_forward(x, w1, w2, w3, compute_dtype=jnp.float32))
    assert out_f32.shape == (B, S, D)
    assert jnp.allclose(out_f32, ref, atol=1e-4, rtol=1e-4), "f32 mismatch vs reference"

    # bf16 compute path (default / MXU-friendly): looser tolerance.
    out_bf16 = jax.block_until_ready(feed_forward(x, w1, w2, w3))
    assert out_bf16.shape == (B, S, D)
    assert jnp.allclose(out_bf16, ref, atol=2e-2, rtol=2e-2), "bf16 mismatch vs reference"

    print("KERNEL_OK")
</pallas_src>

<mosaic_0001>
module attributes {stable_mosaic.version = 11 : i64} {
  func.func @ffn_kernel(%arg0: i32, %arg1: i32, %arg2: memref<16x64xf32, #tpu.memory_space<vmem>>, %arg3: memref<64x256xf32, #tpu.memory_space<vmem>>, %arg4: memref<128x64xf32, #tpu.memory_space<vmem>>, %arg5: memref<16x64xf32, #tpu.memory_space<vmem>>, %arg6: memref<16x64xf32, #tpu.memory_space<vmem>>) attributes {dimension_semantics = [#tpu.dimension_semantics<parallel>, #tpu.dimension_semantics<arbitrary>], iteration_bounds = array<i64: 1, 1>, scalar_prefetch = 0 : i64, scratch_operands = 1 : i64, tpu.core_type = #tpu.core_type<tc>, window_params = [{transform_indices = @transform_0, window_bounds = array<i64: 16, 64>}, {transform_indices = @transform_1, window_bounds = array<i64: 64, 256>}, {transform_indices = @transform_2, window_bounds = array<i64: 128, 64>}, {transform_indices = @transform_3, window_bounds = array<i64: 16, 64>}]} {
    %c0_i32 = arith.constant 0 : i32
    %0 = arith.cmpi eq, %arg1, %c0_i32 : i32
    %1 = arith.extui %0 : i1 to i32
    %c0_i32_0 = arith.constant 0 : i32
    %2 = arith.cmpi ne, %1, %c0_i32_0 : i32
    scf.if %2 {
      %cst_14 = arith.constant 0.000000e+00 : f32
      %23 = vector.broadcast %cst_14 : f32 to vector<16x64xf32>
      %c0_15 = arith.constant 0 : index
      %c0_16 = arith.constant 0 : index
      %24 = vector.load %arg6[%c0_15, %c0_16] : memref<16x64xf32, #tpu.memory_space<vmem>>, vector<16x64xf32>
      tpu.vector_store %arg6[%c0_15, %c0_16], %23 {strides = array<i32>} : memref<16x64xf32, #tpu.memory_space<vmem>>, vector<16x64xf32>,
    } else {
    }
    %c0 = arith.constant 0 : index
    %c0_1 = arith.constant 0 : index
    %3 = vector.load %arg2[%c0, %c0_1] : memref<16x64xf32, #tpu.memory_space<vmem>>, vector<16x64xf32>
    %c0_2 = arith.constant 0 : index
    %c0_3 = arith.constant 0 : index
    %4 = vector.load %arg3[%c0_2, %c0_3] : memref<64x256xf32, #tpu.memory_space<vmem>>, vector<64x256xf32>
    %cst = arith.constant dense<0.000000e+00> : vector<16x256xf32>
    %5 = tpu.matmul %3, %4, %cst {dimension_numbers = #tpu.dot_dimension_numbers<[1], [0], [0], [1], [0, 0, 1, 1], [], []>} : vector<16x64xf32>, vector<64x256xf32>, vector<16x256xf32> -> vector<16x256xf32>
    %6 = vector.extract_strided_slice %5 {offsets = [0, 0], sizes = [16, 128], strides = [1, 1]} : vector<16x256xf32> to vector<16x128xf32>
    %7 = vector.extract_strided_slice %5 {offsets = [0, 128], sizes = [16, 128], strides = [1, 1]} : vector<16x256xf32> to vector<16x128xf32>
    %8 = arith.negf %6 : vector<16x128xf32>
    %9 = math.exp %8 : vector<16x128xf32>
    %cst_4 = arith.constant 1.000000e+00 : f32
    %10 = vector.broadcast %cst_4 : f32 to vector<16x128xf32>
    %11 = arith.addf %10, %9 : vector<16x128xf32>
    %12 = arith.divf %10, %11 : vector<16x128xf32>
    %13 = arith.mulf %6, %12 : vector<16x128xf32>
    %14 = arith.mulf %13, %7 : vector<16x128xf32>
    %c0_5 = arith.constant 0 : index
    %c0_6 = arith.constant 0 : index
    %15 = vector.load %arg6[%c0_5, %c0_6] : memref<16x64xf32, #tpu.memory_space<vmem>>, vector<16x64xf32>
    %c0_7 = arith.constant 0 : index
    %c0_8 = arith.constant 0 : index
    %16 = vector.load %arg4[%c0_7, %c0_8] : memref<128x64xf32, #tpu.memory_space<vmem>>, vector<128x64xf32>
    %cst_9 = arith.constant dense<0.000000e+00> : vector<16x64xf32>
    %17 = tpu.matmul %14, %16, %cst_9 {dimension_numbers = #tpu.dot_dimension_numbers<[1], [0], [0], [1], [0, 0, 1, 1], [], []>} : vector<16x128xf32>, vector<128x64xf32>, vector<16x64xf32> -> vector<16x64xf32>
    %18 = arith.addf %15, %17 : vector<16x64xf32>
    %c0_10 = arith.constant 0 : index
    %c0_11 = arith.constant 0 : index
    %19 = vector.load %arg6[%c0_10, %c0_11] : memref<16x64xf32, #tpu.memory_space<vmem>>, vector<16x64xf32>
    tpu.vector_store %arg6[%c0_10, %c0_11], %18 {strides = array<i32>} : memref<16x64xf32, #tpu.memory_space<vmem>>, vector<16x64xf32>,
    %c0_i32_12 = arith.constant 0 : i32
    %20 = arith.cmpi eq, %arg1, %c0_i32_12 : i32
    %21 = arith.extui %20 : i1 to i32
    %c0_i32_13 = arith.constant 0 : i32
    %22 = arith.cmpi ne, %21, %c0_i32_13 : i32
    scf.if %22 {
      %c0_14 = arith.constant 0 : index
      %c0_15 = arith.constant 0 : index
      %23 = vector.load %arg6[%c0_14, %c0_15] : memref<16x64xf32, #tpu.memory_space<vmem>>, vector<16x64xf32>
      %c0_16 = arith.constant 0 : index
      %c0_17 = arith.constant 0 : index
      %24 = vector.load %arg5[%c0_16, %c0_17] : memref<16x64xf32, #tpu.memory_space<vmem>>, vector<16x64xf32>
      tpu.vector_store %arg5[%c0_16, %c0_17], %23 {strides = array<i32>} : memref<16x64xf32, #tpu.memory_space<vmem>>, vector<16x64xf32>,
    } else {
    }
    return
  }
  func.func @transform_0(%arg0: i32, %arg1: i32) -> (i32, i32) {
    %c0_i32 = arith.constant 0 : i32
    %c0_i32_0 = arith.constant 0 : i32
    return %arg0, %c0_i32 : i32, i32
  }
  func.func @transform_1(%arg0: i32, %arg1: i32) -> (i32, i32) {
    %c0_i32 = arith.constant 0 : i32
    %c0_i32_0 = arith.constant 0 : i32
    return %c0_i32, %arg1 : i32, i32
  }
  func.func @transform_2(%arg0: i32, %arg1: i32) -> (i32, i32) {
    %c0_i32 = arith.constant 0 : i32
    %c0_i32_0 = arith.constant 0 : i32
    return %arg1, %c0_i32 : i32, i32
  }
  func.func @transform_3(%arg0: i32, %arg1: i32) -> (i32, i32) {
    %c0_i32 = arith.constant 0 : i32
    %c0_i32_0 = arith.constant 0 : i32
    return %arg0, %c0_i32 : i32, i32
  }
}

</mosaic_0001>

<llo_original>
// kernel: tpu_custom_call.1
$region0: #{tpu_custom_call.1}
  #allocation0 [shape = 'u32[]', space=smem, size = 0x4, offset = 0x4, fixed_abs, tag = 'smem constant byte address 0x4 - core index']
  #allocation1 [shape = 'u32[144,128]{1,0:T(1,128)}', space=vmem, size = 0x12000, scoped, tag = 'internal scratch']
  #allocation2 [shape = 'f32[16,64]{1,0:T(8,128)}', space=vmem, size = 0x2000, scoped, tag = 'scratch operand']
  %s0 = inlined_call_operand.vmem [shape: f32[16,64], index: 0, kind: input, shape index: {}]
  %s1 = inlined_call_operand.vmem [shape: f32[64,256], index: 1, kind: input, shape index: {}]
  %s2 = inlined_call_operand.vmem [shape: f32[128,64], index: 2, kind: input, shape index: {}]
  %s3 = inlined_call_operand.hbm [shape: f32[16,64], index: 3, kind: output, shape index: {}]
  %s4 = sld [smem:[#allocation0]]
  $region30: #{tpu_custom_call.1} parent=0
    _
  %s6 = ssub.s32 1, %s4
  %s7 = scalar_select 0, %s6, %s4
  $region1: #{tpu_custom_call.1} parent=0
    #allocation3 [shape = 'u8[8192]{0}', space=vmem, size = 0x2000, scoped, tag = 'output window, operand 0, single buffered']
    #allocation4 [shape = 's32[1]{0}', space=sflag, size = 0x4, scoped, tag = 'scoped memory for tpu_custom_call.1']
    %8 = vsyncpa [#allocation4], 0
    // Predicated region
    $region2: #{tpu_custom_call.1} parent=1 // pred_check
      _
    $region3: #{tpu_custom_call.1} parent=1 // pred_check_branch
      %10 = sbr.rel (0) target = $region5
    $region4: #{tpu_custom_call.1} parent=1 // pred_region
      _
    $region5: #{tpu_custom_call.1} parent=1 // pred_fallthru
      _
    // Predicated region
    $region6: #{tpu_custom_call.1} parent=1 // pred_check
      _
    $region7: #{tpu_custom_call.1} parent=1 // pred_check_branch
      %12 = sbr.rel (0) target = $region9
    $region8: #{tpu_custom_call.1} parent=1 // pred_region
      _
    $region9: #{tpu_custom_call.1} parent=1 // pred_fallthru
      _
    // Predicated region
    $region10: #{tpu_custom_call.1} parent=1 // pred_check
      _
    $region11: #{tpu_custom_call.1} parent=1 // pred_check_branch
      %14 = sbr.rel (0) target = $region13
    $region12: #{tpu_custom_call.1} parent=1 // pred_region
      _
    $region13: #{tpu_custom_call.1} parent=1 // pred_fallthru
      _
    %p15 = scmp.eq.s32.totalorder 0, 0
    // Predicated region
    $region14: #{tpu_custom_call.1} parent=1 // pred_check
      %p16 = pneg %p15
    $region15: #{tpu_custom_call.1} parent=1 // pred_check_branch
      %18 = sbr.rel (%p16) target = $region17
    $region16: #{tpu_custom_call.1} parent=1 // pred_region
      %vm19 = vcmask 523264
      %20 = vst.msk [vmem:[#allocation2] sm:$0xff] %vm19, 0.0
      %21 = vst.msk [vmem:[#allocation2 + $0x8] sm:$0xff] %vm19, 0.0
    $region17: #{tpu_custom_call.1} parent=1 // pred_fallthru
      _
    %v22 = vld [vmem:[%s0] sm:$0xff]
    %v23 = vld [vmem:[%s0 + $0x8] sm:$0xff]
    %v24 = vld [vmem:[%s1] sm:$0xff]
    %v25 = vld [vmem:[%s1 + $0x8] sm:$0xff]
    %v26 = vld [vmem:[%s1 + $0x10] sm:$0xff]
    %v27 = vld [vmem:[%s1 + $0x18] sm:$0xff]
    %v28 = vld [vmem:[%s1 + $0x20] sm:$0xff]
    %v29 = vld [vmem:[%s1 + $0x28] sm:$0xff]
    %v30 = vld [vmem:[%s1 + $0x30] sm:$0xff]
    %v31 = vld [vmem:[%s1 + $0x38] sm:$0xff]
    %v32 = vld [vmem:[%s1 + $0x40] sm:$0xff]
    %v33 = vld [vmem:[%s1 + $0x48] sm:$0xff]
    %v34 = vld [vmem:[%s1 + $0x50] sm:$0xff]
    %v35 = vld [vmem:[%s1 + $0x58] sm:$0xff]
    %v36 = vld [vmem:[%s1 + $0x60] sm:$0xff]
    %v37 = vld [vmem:[%s1 + $0x68] sm:$0xff]
    %v38 = vld [vmem:[%s1 + $0x70] sm:$0xff]
    %v39 = vld [vmem:[%s1 + $0x78] sm:$0xff]
    %vm40 = vcmask 523264
    %v42 = vsel %vm40, %v22, 0
    %v45 = vsel %vm40, %v23, 0
    %47 = vmatprep.subr.mxu0 0.0
    %48 = vmatpush1.msra.mxu0 0.0
    %49 = vmatprep.subr.mxu0 0.0
    %50 = vmatpush1.msra.mxu0 0.0
    %51 = vmatprep.subr.mxu0 0.0
    %52 = vmatpush1.msra.mxu0 0.0
    %53 = vmatprep.subr.mxu0 0.0
    %54 = vmatpush1.msra.mxu0 0.0
    %55 = vmatprep.subr.mxu0 0.0
    %56 = vmatpush1.msra.mxu0 0.0
    %57 = vmatprep.subr.mxu0 0.0
    %58 = vmatpush1.msra.mxu0 0.0
    %59 = vmatprep.subr.mxu0 0.0
    %60 = vmatpush1.msra.mxu0 0.0
    %61 = vmatprep.subr.mxu0 0.0
    %62 = vmatpush1.msra.mxu0 0.0
    %63 = vmatprep.subr.mxu0 %v39
    %64 = vmatpush1.msra.mxu0 %v38
    %65 = vmatprep.subr.mxu0 %v37
    %66 = vmatpush1.msra.mxu0 %v36
    %67 = vmatprep.subr.mxu0 %v35
    %68 = vmatpush1.msra.mxu0 %v34
    %69 = vmatprep.subr.mxu0 %v33
    %70 = vmatpush1.msra.mxu0 %v32
    %71 = vmatprep.subr.mxu0 %v31
    %72 = vmatpush1.msra.mxu0 %v30
    %73 = vmatprep.subr.mxu0 %v29
    %74 = vmatpush1.msra.mxu0 %v28
    %75 = vmatprep.subr.mxu0 %v27
    %76 = vmatpush1.msra.mxu0 %v26
    %77 = vmatprep.subr.mxu0 %v25
    %78 = vmatpush1.msra.mxu0 %v24
    %79 = vmatprep.subr.mxu0 0.0
    %80 = vmatpush2.msra.mxu0 0.0
    %81 = vmatprep.subr.mxu0 0.0
    %82 = vmatpush2.msra.mxu0 0.0
    %83 = vmatprep.subr.mxu0 0.0
    %84 = vmatpush2.msra.mxu0 0.0
    %85 = vmatprep.subr.mxu0 0.0
    %86 = vmatpush2.msra.mxu0 0.0
    %87 = vmatprep.subr.mxu0 0.0
    %88 = vmatpush2.msra.mxu0 0.0
    %89 = vmatprep.subr.mxu0 0.0
    %90 = vmatpush2.msra.mxu0 0.0
    %91 = vmatprep.subr.mxu0 0.0
    %92 = vmatpush2.msra.mxu0 0.0
    %93 = vmatprep.subr.mxu0 0.0
    %94 = vmatpush2.msra.mxu0 0.0
    %95 = vmatprep.subr.mxu0 0.0
    %96 = vmatpush2.msra.mxu0 0.0
    %97 = vmatprep.subr.mxu0 0.0
    %98 = vmatpush2.msra.mxu0 0.0
    %99 = vmatprep.subr.mxu0 0.0
    %100 = vmatpush2.msra.mxu0 0.0
    %101 = vmatprep.subr.mxu0 0.0
    %102 = vmatpush2.msra.mxu0 0.0
    %103 = vmatprep.subr.mxu0 0.0
    %104 = vmatpush2.msra.mxu0 0.0
    %105 = vmatprep.subr.mxu0 0.0
    %106 = vmatpush2.msra.mxu0 0.0
    %107 = vmatprep.subr.mxu0 0.0
    %108 = vmatpush2.msra.mxu0 0.0
    %109 = vmatprep.subr.mxu0 0.0
    %110 = vmatpush2.msra.mxu0 0.0
    %111 = vmatprep.mubr.f32.mxu0 0.0
    %112 = vmatmul.mubr.f32.gmra.mxu0 %v42
    %v113 = vpop.f32.mrf.mxu0
    %v114 = vadd.f32 0.0, %v113
    %v115 = vpop.f32.mrf.mxu0
    %v116 = vadd.f32 0.0, %v115
    %117 = vmatprep.mubr.f32.mxu0 0.0
    %118 = vmatmul.mubr.f32.gmra.mxu0 %v45
    %v119 = vpop.f32.mrf.mxu0
    %v120 = vadd.f32 0.0, %v119
    %v121 = vpop.f32.mrf.mxu0
    %v122 = vadd.f32 0.0, %v121
    %123 = vdwg.mxu0
    %v124 = vxor.u32 %v114, 2147483648
    %v125 = vxor.u32 %v120, 2147483648
    %v126 = vmul.f32 %v124, 1.442695
    %v127 = vpow.pop %v126
    %v128 = vmul.f32 %v125, 1.442695
    %v129 = vpow.pop %v128
    %v130 = vadd.f32 %v127, 1.0
    %v131 = vadd.f32 %v129, 1.0
    %v132 = vrcp.pop %v130
    %v133 = vmul.f32 1.0, %v132
    %v134 = vrcp.pop %v131
    %v135 = vmul.f32 1.0, %v134
    %v136 = vmul.f32 %v114, %v133
    %v137 = vmul.f32 %v120, %v135
    %v138 = vmul.f32 %v136, %v116
    %v139 = vmul.f32 %v137, %v122
    %v140 = vld [vmem:[#allocation2] sm:$0xff]
    %v141 = vld [vmem:[#allocation2 + $0x8] sm:$0xff]
    %v142 = vld [vmem:[%s2] sm:$0xff]
    %v143 = vld [vmem:[%s2 + $0x8] sm:$0xff]
    %v144 = vld [vmem:[%s2 + $0x10] sm:$0xff]
    %v145 = vld [vmem:[%s2 + $0x18] sm:$0xff]
    %v146 = vld [vmem:[%s2 + $0x20] sm:$0xff]
    %v147 = vld [vmem:[%s2 + $0x28] sm:$0xff]
    %v148 = vld [vmem:[%s2 + $0x30] sm:$0xff]
    %v149 = vld [vmem:[%s2 + $0x38] sm:$0xff]
    %v150 = vld [vmem:[%s2 + $0x40] sm:$0xff]
    %v151 = vld [vmem:[%s2 + $0x48] sm:$0xff]
    %v152 = vld [vmem:[%s2 + $0x50] sm:$0xff]
    %v153 = vld [vmem:[%s2 + $0x58] sm:$0xff]
    %v154 = vld [vmem:[%s2 + $0x60] sm:$0xff]
    %v155 = vld [vmem:[%s2 + $0x68] sm:$0xff]
    %v156 = vld [vmem:[%s2 + $0x70] sm:$0xff]
    %v157 = vld [vmem:[%s2 + $0x78] sm:$0xff]
    %158 = vmatprep.subr.mxu0 0.0
    %159 = vmatpush1.msra.mxu0 %v157
    %160 = vmatprep.subr.mxu0 0.0
    %161 = vmatpush1.msra.mxu0 %v156
    %162 = vmatprep.subr.mxu0 0.0
    %163 = vmatpush1.msra.mxu0 %v155
    %164 = vmatprep.subr.mxu0 0.0
    %165 = vmatpush1.msra.mxu0 %v154
    %166 = vmatprep.subr.mxu0 0.0
    %167 = vmatpush1.msra.mxu0 %v153
    %168 = vmatprep.subr.mxu0 0.0
    %169 = vmatpush1.msra.mxu0 %v152
    %170 = vmatprep.subr.mxu0 0.0
    %171 = vmatpush1.msra.mxu0 %v151
    %172 = vmatprep.subr.mxu0 0.0
    %173 = vmatpush1.msra.mxu0 %v150
    %174 = vmatprep.subr.mxu0 0.0
    %175 = vmatpush1.msra.mxu0 %v149
    %176 = vmatprep.subr.mxu0 0.0
    %177 = vmatpush1.msra.mxu0 %v148
    %178 = vmatprep.subr.mxu0 0.0
    %179 = vmatpush1.msra.mxu0 %v147
    %180 = vmatprep.subr.mxu0 0.0
    %181 = vmatpush1.msra.mxu0 %v146
    %182 = vmatprep.subr.mxu0 0.0
    %183 = vmatpush1.msra.mxu0 %v145
    %184 = vmatprep.subr.mxu0 0.0
    %185 = vmatpush1.msra.mxu0 %v144
    %186 = vmatprep.subr.mxu0 0.0
    %187 = vmatpush1.msra.mxu0 %v143
    %188 = vmatprep.subr.mxu0 0.0
    %189 = vmatpush1.msra.mxu0 %v142
    %190 = vmatprep.subr.mxu0 0.0
    %191 = vmatpush2.msra.mxu0 0.0
    %192 = vmatprep.subr.mxu0 0.0
    %193 = vmatpush2.msra.mxu0 0.0
    %194 = vmatprep.subr.mxu0 0.0
    %195 = vmatpush2.msra.mxu0 0.0
    %196 = vmatprep.subr.mxu0 0.0
    %197 = vmatpush2.msra.mxu0 0.0
    %198 = vmatprep.subr.mxu0 0.0
    %199 = vmatpush2.msra.mxu0 0.0
    %200 = vmatprep.subr.mxu0 0.0
    %201 = vmatpush2.msra.mxu0 0.0
    %202 = vmatprep.subr.mxu0 0.0
    %203 = vmatpush2.msra.mxu0 0.0
    %204 = vmatprep.subr.mxu0 0.0
    %205 = vmatpush2.msra.mxu0 0.0
    %206 = vmatprep.subr.mxu0 0.0
    %207 = vmatpush2.msra.mxu0 0.0
    %208 = vmatprep.subr.mxu0 0.0
    %209 = vmatpush2.msra.mxu0 0.0
    %210 = vmatprep.subr.mxu0 0.0
    %211 = vmatpush2.msra.mxu0 0.0
    %212 = vmatprep.subr.mxu0 0.0
    %213 = vmatpush2.msra.mxu0 0.0
    %214 = vmatprep.subr.mxu0 0.0
    %215 = vmatpush2.msra.mxu0 0.0
    %216 = vmatprep.subr.mxu0 0.0
    %217 = vmatpush2.msra.mxu0 0.0
    %218 = vmatprep.subr.mxu0 0.0
    %219 = vmatpush2.msra.mxu0 0.0
    %220 = vmatprep.subr.mxu0 0.0
    %221 = vmatpush2.msra.mxu0 0.0
    %222 = vmatprep.mubr.f32.mxu0 0.0
    %223 = vmatmul.mubr.f32.gmra.mxu0 %v138
    %v224 = vpop.f32.mrf.mxu0
    %v225 = vadd.f32 0.0, %v224
    %v226 = vpop.f32.mrf.mxu0
    %227 = vmatprep.mubr.f32.mxu0 0.0
    %228 = vmatmul.mubr.f32.gmra.mxu0 %v139
    %v229 = vpop.f32.mrf.mxu0
    %v230 = vadd.f32 0.0, %v229
    %v231 = vpop.f32.mrf.mxu0
    %232 = vdwg.mxu0
    %v233 = vadd.f32 %v140, %v225
    %v234 = vadd.f32 %v141, %v230
    %235 = vst.msk [vmem:[#allocation2] sm:$0xff] %vm40, %v233
    %236 = vst.msk [vmem:[#allocation2 + $0x8] sm:$0xff] %vm40, %v234
    // Predicated region
    $region18: #{tpu_custom_call.1} parent=1 // pred_check
      %p237 = pneg %p15
    $region19: #{tpu_custom_call.1} parent=1 // pred_check_branch
      %239 = sbr.rel (%p237) target = $region21
    $region20: #{tpu_custom_call.1} parent=1 // pred_region
      %v240 = vld [vmem:[#allocation2] sm:$0xff]
      %v241 = vld [vmem:[#allocation2 + $0x8] sm:$0xff]
      %242 = vst.msk [vmem:[#allocation3] sm:$0xff] %vm40, %v240
      %243 = vst.msk [vmem:[#allocation3 + $0x8] sm:$0xff] %vm40, %v241
    $region21: #{tpu_custom_call.1} parent=1 // pred_fallthru
      _
    // Predicated region
    $region22: #{tpu_custom_call.1} parent=1 // pred_check
      _
    $region23: #{tpu_custom_call.1} parent=1 // pred_check_branch
      %245 = sbr.rel (0) target = $region25
    $region24: #{tpu_custom_call.1} parent=1 // pred_region
      %s247 = ssub.s32 256, 256
      %248 = vsyncadd [#allocation4], %s247
      %s249 = sshll.u32 [#allocation3], 4
      %s250 = int_to_ptr.vmem [resolvable:$true] %s249
      %255 = dma.vmem_to_hbm [thread:$0]  %s250, 256, %s3, [#allocation4], 128, 128, 8
    $region25: #{tpu_custom_call.1} parent=1 // pred_fallthru
      _
    // Predicated region
    $region26: #{tpu_custom_call.1} parent=1 // pred_check
      _
    $region27: #{tpu_custom_call.1} parent=1 // pred_check_branch
      %257 = sbr.rel (0) target = $region29
    $region28: #{tpu_custom_call.1} parent=1 // pred_region
      %258 = dma.done [#allocation4], 256
    $region29: #{tpu_custom_call.1} parent=1 // pred_fallthru
      _
    %259 = vsyncpa [#allocation4], 1

</llo_original>
